<compile_context>
chip_gen: v5e
topology: v5e:2x2
jax: 0.10.0
libtpu: 0.0.40
codegen_flags: <defaults>
</compile_context>

<pallas_src>
import jax
import jax.numpy as jnp
from jax import lax
from jax.experimental import pallas as pl
from jax.experimental.pallas import tpu as pltpu


def _round_up(x, m):
    return ((x + m - 1) // m) * m


def _make_context_kernel(layer_cfg, N, H0, W0, PW):
    """layer_cfg: tuple of (Cin, Cout, K) per conv layer (all static)."""
    HW0 = H0 * W0
    L = len(layer_cfg)
    C_L = layer_cfg[-1][1]

    def kernel(*refs):
        x0_ref = refs[0]
        w_refs = refs[1:1 + 2 * L]          # (w2d_1, b_1, ..., w2d_L, b_L)
        s_ref = refs[1 + 2 * L]             # (H0*W0, Ho*Wo) 0/1 selection
        o_ref = refs[2 + 2 * L]             # (N, C_L, Ho*Wo) output
        act_ref = refs[3 + 2 * L]           # (max_c, AW) VMEM activations
        p_ref = refs[4 + 2 * L]             # (max_rows, PW) im2col buffer

        # Zero once so padding / never-written columns stay finite; they feed
        # only "garbage" base positions that the final selection drops, but
        # must not be NaN.
        act_ref[...] = jnp.zeros(act_ref.shape, act_ref.dtype)

        src = x0_ref                         # layer-0 input lives in its own ref
        for l in range(L):
            cin, cout, k = layer_cfg[l]
            w2d_ref = w_refs[2 * l]          # (cout, k*k*cin), lane-major taps
            b_ref = w_refs[2 * l + 1]        # (cout, 1)

            # Implicit im2col: each tap is a static lane-shifted slice of the
            # flat activation; taps are stacked along the sublane axis.
            for kh in range(k):
                for kw in range(k):
                    t = kh * k + kw
                    off = kh * W0 + kw
                    p_ref[t * cin:(t + 1) * cin, :] = src[0:cin, off:off + PW]

            rows = k * k * cin
            acc = jnp.dot(w2d_ref[...], p_ref[0:rows, :],
                          preferred_element_type=jnp.float32)
            acc = acc + b_ref[...]                       # bias broadcast
            act_ref[0:cout, 0:PW] = acc                  # stays in VMEM
            src = act_ref

        # Compact the H0*W0 base grid to the true Ho*Wo grid with a constant
        # 0/1 selection matmul; emit one (C_L, Ho*Wo) block per image.
        sel = s_ref[...]
        for n in range(N):
            a_n = act_ref[0:C_L, n * HW0:(n + 1) * HW0]  # (C_L, H0*W0)
            c_n = jnp.dot(a_n, sel, preferred_element_type=jnp.float32)
            o_ref[n] = c_n.astype(o_ref.dtype)

    return kernel


@jax.jit
def context_forward(x, params):
    """Fused forward of the whole Context conv stack + flatten.

    x: (N, C0, H0, W0); params: tuple of (w, b) with w (Cout, Cin, K, K),
    b (Cout,). Returns (N, C_L*H_L*W_L) float32 in PyTorch flatten order.
    """
    x = x.astype(jnp.float32)
    N, C0, H0, W0 = x.shape

    layer_cfg = []
    cin = C0
    for (w, _) in params:
        cout, wcin, kh, kw = w.shape
        assert wcin == cin and kh == kw, "unexpected conv weight shape"
        layer_cfg.append((cin, cout, kh))
        cin = cout
    layer_cfg = tuple(layer_cfg)
    L = len(layer_cfg)
    C_L = layer_cfg[-1][1]

    shrink = sum(k - 1 for (_, _, k) in layer_cfg)
    H_L, W_L = H0 - shrink, W0 - shrink
    assert H_L > 0 and W_L > 0
    HW0, HW_L = H0 * W0, H_L * W_L
    NBASE = N * HW0

    max_off = max((k - 1) * (W0 + 1) for (_, _, k) in layer_cfg)
    PW = _round_up(NBASE, 128)             # compute width (lane-dense, >=128)
    AW = _round_up(PW + max_off, 128)      # activation width incl. shift margin
    max_c = max(c for (_, c, _) in layer_cfg)
    max_rows = max(k * k * c for (c, _, k) in layer_cfg)

    # Lane-major, zero-padded input: X0[c, n*H0*W0 + h*W0 + w] = x[n, c, h, w].
    x0 = jnp.transpose(x, (1, 0, 2, 3)).reshape(C0, NBASE)
    x0 = jnp.pad(x0, ((0, 0), (0, AW - NBASE)))

    # 2-D lane-major weights: column index = (kh*K + kw)*Cin + cin.
    flat_params = []
    for (w, b), (ci, co, k) in zip(params, layer_cfg):
        w2d = jnp.transpose(w.astype(jnp.float32), (0, 2, 3, 1)).reshape(co, k * k * ci)
        flat_params += [w2d, b.astype(jnp.float32).reshape(co, 1)]

    # 0/1 selection: base b = ph*W0 + pw  ->  output q = ph*W_L + pw.
    q = jnp.arange(HW_L)
    b_of_q = (q // W_L) * W0 + (q % W_L)
    sel = (jnp.arange(HW0)[:, None] == b_of_q[None, :]).astype(jnp.float32)

    # Advisory cost estimate so XLA schedules the tiny custom call sensibly.
    flops = 0
    h, w_ = H0, W0
    for (ci, co, k) in layer_cfg:
        h, w_ = h - (k - 1), w_ - (k - 1)
        flops += 2 * N * co * ci * k * k * h * w_
    bytes_accessed = 4 * (x.size + sum(int(p.size) for fp in params for p in fp)
                          + N * C_L * HW_L)

    kernel = _make_context_kernel(layer_cfg, N, H0, W0, PW)
    vmem = pl.BlockSpec(memory_space=pltpu.MemorySpace.VMEM)

    out = pl.pallas_call(
        kernel,
        out_shape=jax.ShapeDtypeStruct((N, C_L, HW_L), jnp.float32),
        in_specs=[vmem] * (2 + 2 * L),
        out_specs=vmem,
        scratch_shapes=[
            pltpu.VMEM((max_c, AW), jnp.float32),      # VMEM-resident activations
            pltpu.VMEM((max_rows, PW), jnp.float32),   # implicit-im2col buffer
        ],
        cost_estimate=pl.CostEstimate(flops=flops, transcendentals=0,
                                      bytes_accessed=bytes_accessed),
    )(x0, *flat_params, sel)

    # Free reshape: collapses the trailing contiguous (C_L, Ho*Wo) dims into
    # C_L*Ho*Wo = 512, exactly PyTorch's flatten order.
    return out.reshape(N, C_L * HW_L)


class ContextPallas:
    """Pallas port of Context: valid-padding Conv2d stack, Flatten, unsqueeze(0)."""

    conv_out_size = 512

    def __init__(self, filter_widths, filter_depths, key):
        self.params = []
        for i in range(len(filter_depths) - 1):
            cin, cout, k = filter_depths[i], filter_depths[i + 1], filter_widths[i]
            key, kw_key, kb_key = jax.random.split(key, 3)
            fan_in = cin * k * k
            bound = 1.0 / float(fan_in) ** 0.5
            w = jax.random.uniform(kw_key, (cout, cin, k, k),
                                   minval=-bound, maxval=bound, dtype=jnp.float32)
            b = jax.random.uniform(kb_key, (cout,),
                                   minval=-bound, maxval=bound, dtype=jnp.float32)
            self.params.append((w, b))

    def __call__(self, x):
        feats = context_forward(x, tuple(self.params))   # (N, 512)
        return feats[None, ...]                          # unsqueeze(0)


def _reference_forward(x, params):
    x = x.astype(jnp.float32)
    for w, b in params:
        x = lax.conv_general_dilated(
            x, w, window_strides=(1, 1), padding="VALID",
            dimension_numbers=("NCHW", "OIHW", "NCHW"))
        x = x + b.reshape(1, -1, 1, 1)
    feats = x.reshape(x.shape[0], -1)
    return feats[None, ...]


if __name__ == "__main__":
    key = jax.random.PRNGKey(0)
    key, xkey = jax.random.split(key)

    # Matches the module docstring: input (N, 1, 12, 12); 1->4->8 channels,
    # 3x3 kernels -> flattened size 8*8*8 = 512 == Context.conv_out_size.
    filter_depths = [1, 4, 8]
    filter_widths = [3, 3]
    x = jax.random.normal(xkey, (2, 1, 12, 12), dtype=jnp.float32)

    model = ContextPallas(filter_widths, filter_depths, key)

    out = model(x)
    out = jax.block_until_ready(out)

    ref = _reference_forward(x, model.params)
    assert out.shape == (1, 2, 512), out.shape
    assert jnp.allclose(out, ref, atol=1e-4, rtol=1e-4), float(
        jnp.max(jnp.abs(out - ref)))

    print("KERNEL_OK")
</pallas_src>

<mosaic_0001>
module attributes {stable_mosaic.version = 11 : i64} {
  func.func @kernel(%arg0: memref<1x512xf32, #tpu.memory_space<vmem>>, %arg1: memref<4x9xf32, #tpu.memory_space<vmem>>, %arg2: memref<4x1xf32, #tpu.memory_space<vmem>>, %arg3: memref<8x36xf32, #tpu.memory_space<vmem>>, %arg4: memref<8x1xf32, #tpu.memory_space<vmem>>, %arg5: memref<144x64xf32, #tpu.memory_space<vmem>>, %arg6: memref<2x8x64xf32, #tpu.memory_space<vmem>>, %arg7: memref<8x512xf32, #tpu.memory_space<vmem>>, %arg8: memref<36x384xf32, #tpu.memory_space<vmem>>) attributes {dimension_semantics = [], scalar_prefetch = 0 : i64, scratch_operands = 2 : i64, tpu.core_type = #tpu.core_type<tc>} {
    %cst = arith.constant 0.000000e+00 : f32
    %0 = vector.broadcast %cst : f32 to vector<8x512xf32>
    %c0 = arith.constant 0 : index
    %c0_0 = arith.constant 0 : index
    %1 = vector.load %arg7[%c0, %c0_0] : memref<8x512xf32, #tpu.memory_space<vmem>>, vector<8x512xf32>
    tpu.vector_store %arg7[%c0, %c0_0], %0 {strides = array<i32>} : memref<8x512xf32, #tpu.memory_space<vmem>>, vector<8x512xf32>,
    %c0_1 = arith.constant 0 : index
    %c0_2 = arith.constant 0 : index
    %2 = vector.load %arg0[%c0_1, %c0_2] : memref<1x512xf32, #tpu.memory_space<vmem>>, vector<1x384xf32>
    %c0_3 = arith.constant 0 : index
    %c0_4 = arith.constant 0 : index
    %3 = vector.load %arg8[%c0_3, %c0_4] : memref<36x384xf32, #tpu.memory_space<vmem>>, vector<1x384xf32>
    tpu.vector_store %arg8[%c0_3, %c0_4], %2 {strides = array<i32>} : memref<36x384xf32, #tpu.memory_space<vmem>>, vector<1x384xf32>,
    %c0_5 = arith.constant 0 : index
    %c1 = arith.constant 1 : index
    %4 = vector.load %arg0[%c0_5, %c1] : memref<1x512xf32, #tpu.memory_space<vmem>>, vector<1x384xf32>
    %c1_6 = arith.constant 1 : index
    %c0_7 = arith.constant 0 : index
    %5 = vector.load %arg8[%c1_6, %c0_7] : memref<36x384xf32, #tpu.memory_space<vmem>>, vector<1x384xf32>
    tpu.vector_store %arg8[%c1_6, %c0_7], %4 {strides = array<i32>} : memref<36x384xf32, #tpu.memory_space<vmem>>, vector<1x384xf32>,
    %c0_8 = arith.constant 0 : index
    %c2 = arith.constant 2 : index
    %6 = vector.load %arg0[%c0_8, %c2] : memref<1x512xf32, #tpu.memory_space<vmem>>, vector<1x384xf32>
    %c2_9 = arith.constant 2 : index
    %c0_10 = arith.constant 0 : index
    %7 = vector.load %arg8[%c2_9, %c0_10] : memref<36x384xf32, #tpu.memory_space<vmem>>, vector<1x384xf32>
    tpu.vector_store %arg8[%c2_9, %c0_10], %6 {strides = array<i32>} : memref<36x384xf32, #tpu.memory_space<vmem>>, vector<1x384xf32>,
    %c0_11 = arith.constant 0 : index
    %c12 = arith.constant 12 : index
    %8 = vector.load %arg0[%c0_11, %c12] : memref<1x512xf32, #tpu.memory_space<vmem>>, vector<1x384xf32>
    %c3 = arith.constant 3 : index
    %c0_12 = arith.constant 0 : index
    %9 = vector.load %arg8[%c3, %c0_12] : memref<36x384xf32, #tpu.memory_space<vmem>>, vector<1x384xf32>
    tpu.vector_store %arg8[%c3, %c0_12], %8 {strides = array<i32>} : memref<36x384xf32, #tpu.memory_space<vmem>>, vector<1x384xf32>,
    %c0_13 = arith.constant 0 : index
    %c13 = arith.constant 13 : index
    %10 = vector.load %arg0[%c0_13, %c13] : memref<1x512xf32, #tpu.memory_space<vmem>>, vector<1x384xf32>
    %c4 = arith.constant 4 : index
    %c0_14 = arith.constant 0 : index
    %11 = vector.load %arg8[%c4, %c0_14] : memref<36x384xf32, #tpu.memory_space<vmem>>, vector<1x384xf32>
    tpu.vector_store %arg8[%c4, %c0_14], %10 {strides = array<i32>} : memref<36x384xf32, #tpu.memory_space<vmem>>, vector<1x384xf32>,
    %c0_15 = arith.constant 0 : index
    %c14 = arith.constant 14 : index
    %12 = vector.load %arg0[%c0_15, %c14] : memref<1x512xf32, #tpu.memory_space<vmem>>, vector<1x384xf32>
    %c5 = arith.constant 5 : index
    %c0_16 = arith.constant 0 : index
    %13 = vector.load %arg8[%c5, %c0_16] : memref<36x384xf32, #tpu.memory_space<vmem>>, vector<1x384xf32>
    tpu.vector_store %arg8[%c5, %c0_16], %12 {strides = array<i32>} : memref<36x384xf32, #tpu.memory_space<vmem>>, vector<1x384xf32>,
    %c0_17 = arith.constant 0 : index
    %c24 = arith.constant 24 : index
    %14 = vector.load %arg0[%c0_17, %c24] : memref<1x512xf32, #tpu.memory_space<vmem>>, vector<1x384xf32>
    %c6 = arith.constant 6 : index
    %c0_18 = arith.constant 0 : index
    %15 = vector.load %arg8[%c6, %c0_18] : memref<36x384xf32, #tpu.memory_space<vmem>>, vector<1x384xf32>
    tpu.vector_store %arg8[%c6, %c0_18], %14 {strides = array<i32>} : memref<36x384xf32, #tpu.memory_space<vmem>>, vector<1x384xf32>,
    %c0_19 = arith.constant 0 : index
    %c25 = arith.constant 25 : index
    %16 = vector.load %arg0[%c0_19, %c25] : memref<1x512xf32, #tpu.memory_space<vmem>>, vector<1x384xf32>
    %c7 = arith.constant 7 : index
    %c0_20 = arith.constant 0 : index
    %17 = vector.load %arg8[%c7, %c0_20] : memref<36x384xf32, #tpu.memory_space<vmem>>, vector<1x384xf32>
    tpu.vector_store %arg8[%c7, %c0_20], %16 {strides = array<i32>} : memref<36x384xf32, #tpu.memory_space<vmem>>, vector<1x384xf32>,
    %c0_21 = arith.constant 0 : index
    %c26 = arith.constant 26 : index
    %18 = vector.load %arg0[%c0_21, %c26] : memref<1x512xf32, #tpu.memory_space<vmem>>, vector<1x384xf32>
    %c8 = arith.constant 8 : index
    %c0_22 = arith.constant 0 : index
    %19 = vector.load %arg8[%c8, %c0_22] : memref<36x384xf32, #tpu.memory_space<vmem>>, vector<1x384xf32>
    tpu.vector_store %arg8[%c8, %c0_22], %18 {strides = array<i32>} : memref<36x384xf32, #tpu.memory_space<vmem>>, vector<1x384xf32>,
    %c0_23 = arith.constant 0 : index
    %c0_24 = arith.constant 0 : index
    %20 = vector.load %arg1[%c0_23, %c0_24] : memref<4x9xf32, #tpu.memory_space<vmem>>, vector<4x9xf32>
    %c0_25 = arith.constant 0 : index
    %c0_26 = arith.constant 0 : index
    %21 = vector.load %arg8[%c0_25, %c0_26] : memref<36x384xf32, #tpu.memory_space<vmem>>, vector<9x384xf32>
    %cst_27 = arith.constant dense<0.000000e+00> : vector<4x384xf32>
    %22 = tpu.matmul %20, %21, %cst_27 {dimension_numbers = #tpu.dot_dimension_numbers<[1], [0], [0], [1], [0, 0, 1, 1], [], []>} : vector<4x9xf32>, vector<9x384xf32>, vector<4x384xf32> -> vector<4x384xf32>
    %c0_28 = arith.constant 0 : index
    %c0_29 = arith.constant 0 : index
    %23 = vector.load %arg2[%c0_28, %c0_29] : memref<4x1xf32, #tpu.memory_space<vmem>>, vector<4x1xf32>
    %24 = vector.broadcast %23 : vector<4x1xf32> to vector<4x384xf32>
    %25 = arith.addf %22, %24 : vector<4x384xf32>
    %c0_30 = arith.constant 0 : index
    %c0_31 = arith.constant 0 : index
    %26 = vector.load %arg7[%c0_30, %c0_31] : memref<8x512xf32, #tpu.memory_space<vmem>>, vector<4x384xf32>
    tpu.vector_store %arg7[%c0_30, %c0_31], %25 {strides = array<i32>} : memref<8x512xf32, #tpu.memory_space<vmem>>, vector<4x384xf32>,
    %c0_32 = arith.constant 0 : index
    %c0_33 = arith.constant 0 : index
    %27 = vector.load %arg7[%c0_32, %c0_33] : memref<8x512xf32, #tpu.memory_space<vmem>>, vector<4x384xf32>
    %c0_34 = arith.constant 0 : index
    %c0_35 = arith.constant 0 : index
    %28 = vector.load %arg8[%c0_34, %c0_35] : memref<36x384xf32, #tpu.memory_space<vmem>>, vector<4x384xf32>
    tpu.vector_store %arg8[%c0_34, %c0_35], %27 {strides = array<i32>} : memref<36x384xf32, #tpu.memory_space<vmem>>, vector<4x384xf32>,
    %c0_36 = arith.constant 0 : index
    %c1_37 = arith.constant 1 : index
    %29 = vector.load %arg7[%c0_36, %c1_37] : memref<8x512xf32, #tpu.memory_space<vmem>>, vector<4x384xf32>
    %c4_38 = arith.constant 4 : index
    %c0_39 = arith.constant 0 : index
    %30 = vector.load %arg8[%c4_38, %c0_39] : memref<36x384xf32, #tpu.memory_space<vmem>>, vector<4x384xf32>
    tpu.vector_store %arg8[%c4_38, %c0_39], %29 {strides = array<i32>} : memref<36x384xf32, #tpu.memory_space<vmem>>, vector<4x384xf32>,
    %c0_40 = arith.constant 0 : index
    %c2_41 = arith.constant 2 : index
    %31 = vector.load %arg7[%c0_40, %c2_41] : memref<8x512xf32, #tpu.memory_space<vmem>>, vector<4x384xf32>
    %c8_42 = arith.constant 8 : index
    %c0_43 = arith.constant 0 : index
    %32 = vector.load %arg8[%c8_42, %c0_43] : memref<36x384xf32, #tpu.memory_space<vmem>>, vector<4x384xf32>
    tpu.vector_store %arg8[%c8_42, %c0_43], %31 {strides = array<i32>} : memref<36x384xf32, #tpu.memory_space<vmem>>, vector<4x384xf32>,
    %c0_44 = arith.constant 0 : index
    %c12_45 = arith.constant 12 : index
    %33 = vector.load %arg7[%c0_44, %c12_45] : memref<8x512xf32, #tpu.memory_space<vmem>>, vector<4x384xf32>
    %c12_46 = arith.constant 12 : index
    %c0_47 = arith.constant 0 : index
    %34 = vector.load %arg8[%c12_46, %c0_47] : memref<36x384xf32, #tpu.memory_space<vmem>>, vector<4x384xf32>
    tpu.vector_store %arg8[%c12_46, %c0_47], %33 {strides = array<i32>} : memref<36x384xf32, #tpu.memory_space<vmem>>, vector<4x384xf32>,
    %c0_48 = arith.constant 0 : index
    %c13_49 = arith.constant 13 : index
    %35 = vector.load %arg7[%c0_48, %c13_49] : memref<8x512xf32, #tpu.memory_space<vmem>>, vector<4x384xf32>
    %c16 = arith.constant 16 : index
    %c0_50 = arith.constant 0 : index
    %36 = vector.load %arg8[%c16, %c0_50] : memref<36x384xf32, #tpu.memory_space<vmem>>, vector<4x384xf32>
    tpu.vector_store %arg8[%c16, %c0_50], %35 {strides = array<i32>} : memref<36x384xf32, #tpu.memory_space<vmem>>, vector<4x384xf32>,
    %c0_51 = arith.constant 0 : index
    %c14_52 = arith.constant 14 : index
    %37 = vector.load %arg7[%c0_51, %c14_52] : memref<8x512xf32, #tpu.memory_space<vmem>>, vector<4x384xf32>
    %c20 = arith.constant 20 : index
    %c0_53 = arith.constant 0 : index
    %38 = vector.load %arg8[%c20, %c0_53] : memref<36x384xf32, #tpu.memory_space<vmem>>, vector<4x384xf32>
    tpu.vector_store %arg8[%c20, %c0_53], %37 {strides = array<i32>} : memref<36x384xf32, #tpu.memory_space<vmem>>, vector<4x384xf32>,
    %c0_54 = arith.constant 0 : index
    %c24_55 = arith.constant 24 : index
    %39 = vector.load %arg7[%c0_54, %c24_55] : memref<8x512xf32, #tpu.memory_space<vmem>>, vector<4x384xf32>
    %c24_56 = arith.constant 24 : index
    %c0_57 = arith.constant 0 : index
    %40 = vector.load %arg8[%c24_56, %c0_57] : memref<36x384xf32, #tpu.memory_space<vmem>>, vector<4x384xf32>
    tpu.vector_store %arg8[%c24_56, %c0_57], %39 {strides = array<i32>} : memref<36x384xf32, #tpu.memory_space<vmem>>, vector<4x384xf32>,
    %c0_58 = arith.constant 0 : index
    %c25_59 = arith.constant 25 : index
    %41 = vector.load %arg7[%c0_58, %c25_59] : memref<8x512xf32, #tpu.memory_space<vmem>>, vector<4x384xf32>
    %c28 = arith.constant 28 : index
    %c0_60 = arith.constant 0 : index
    %42 = vector.load %arg8[%c28, %c0_60] : memref<36x384xf32, #tpu.memory_space<vmem>>, vector<4x384xf32>
    tpu.vector_store %arg8[%c28, %c0_60], %41 {strides = array<i32>} : memref<36x384xf32, #tpu.memory_space<vmem>>, vector<4x384xf32>,
    %c0_61 = arith.constant 0 : index
    %c26_62 = arith.constant 26 : index
    %43 = vector.load %arg7[%c0_61, %c26_62] : memref<8x512xf32, #tpu.memory_space<vmem>>, vector<4x384xf32>
    %c32 = arith.constant 32 : index
    %c0_63 = arith.constant 0 : index
    %44 = vector.load %arg8[%c32, %c0_63] : memref<36x384xf32, #tpu.memory_space<vmem>>, vector<4x384xf32>
    tpu.vector_store %arg8[%c32, %c0_63], %43 {strides = array<i32>} : memref<36x384xf32, #tpu.memory_space<vmem>>, vector<4x384xf32>,
    %c0_64 = arith.constant 0 : index
    %c0_65 = arith.constant 0 : index
    %45 = vector.load %arg3[%c0_64, %c0_65] : memref<8x36xf32, #tpu.memory_space<vmem>>, vector<8x36xf32>
    %c0_66 = arith.constant 0 : index
    %c0_67 = arith.constant 0 : index
    %46 = vector.load %arg8[%c0_66, %c0_67] : memref<36x384xf32, #tpu.memory_space<vmem>>, vector<36x384xf32>
    %cst_68 = arith.constant dense<0.000000e+00> : vector<8x384xf32>
    %47 = tpu.matmul %45, %46, %cst_68 {dimension_numbers = #tpu.dot_dimension_numbers<[1], [0], [0], [1], [0, 0, 1, 1], [], []>} : vector<8x36xf32>, vector<36x384xf32>, vector<8x384xf32> -> vector<8x384xf32>
    %c0_69 = arith.constant 0 : index
    %c0_70 = arith.constant 0 : index
    %48 = vector.load %arg4[%c0_69, %c0_70] : memref<8x1xf32, #tpu.memory_space<vmem>>, vector<8x1xf32>
    %49 = vector.broadcast %48 : vector<8x1xf32> to vector<8x384xf32>
    %50 = arith.addf %47, %49 : vector<8x384xf32>
    %c0_71 = arith.constant 0 : index
    %c0_72 = arith.constant 0 : index
    %51 = vector.load %arg7[%c0_71, %c0_72] : memref<8x512xf32, #tpu.memory_space<vmem>>, vector<8x384xf32>
    tpu.vector_store %arg7[%c0_71, %c0_72], %50 {strides = array<i32>} : memref<8x512xf32, #tpu.memory_space<vmem>>, vector<8x384xf32>,
    %c0_73 = arith.constant 0 : index
    %c0_74 = arith.constant 0 : index
    %52 = vector.load %arg5[%c0_73, %c0_74] : memref<144x64xf32, #tpu.memory_space<vmem>>, vector<144x64xf32>
    %c0_75 = arith.constant 0 : index
    %c0_76 = arith.constant 0 : index
    %53 = vector.load %arg7[%c0_75, %c0_76] : memref<8x512xf32, #tpu.memory_space<vmem>>, vector<8x144xf32>
    %cst_77 = arith.constant dense<0.000000e+00> : vector<8x64xf32>
    %54 = tpu.matmul %53, %52, %cst_77 {dimension_numbers = #tpu.dot_dimension_numbers<[1], [0], [0], [1], [0, 0, 1, 1], [], []>} : vector<8x144xf32>, vector<144x64xf32>, vector<8x64xf32> -> vector<8x64xf32>
    %c0_78 = arith.constant 0 : index
    %c0_79 = arith.constant 0 : index
    %c0_80 = arith.constant 0 : index
    %55 = vector.load %arg6[%c0_78, %c0_79, %c0_80] : memref<2x8x64xf32, #tpu.memory_space<vmem>>, vector<1x8x64xf32>
    %56 = vector.shape_cast %55 : vector<1x8x64xf32> to vector<8x64xf32>
    %57 = vector.shape_cast %54 : vector<8x64xf32> to vector<1x8x64xf32>
    tpu.vector_store %arg6[%c0_78, %c0_79, %c0_80], %57 {strides = array<i32>} : memref<2x8x64xf32, #tpu.memory_space<vmem>>, vector<1x8x64xf32>,
    %c0_81 = arith.constant 0 : index
    %c144 = arith.constant 144 : index
    %58 = vector.load %arg7[%c0_81, %c144] : memref<8x512xf32, #tpu.memory_space<vmem>>, vector<8x144xf32>
    %cst_82 = arith.constant dense<0.000000e+00> : vector<8x64xf32>
    %59 = tpu.matmul %58, %52, %cst_82 {dimension_numbers = #tpu.dot_dimension_numbers<[1], [0], [0], [1], [0, 0, 1, 1], [], []>} : vector<8x144xf32>, vector<144x64xf32>, vector<8x64xf32> -> vector<8x64xf32>
    %c1_83 = arith.constant 1 : index
    %c0_84 = arith.constant 0 : index
    %c0_85 = arith.constant 0 : index
    %60 = vector.load %arg6[%c1_83, %c0_84, %c0_85] : memref<2x8x64xf32, #tpu.memory_space<vmem>>, vector<1x8x64xf32>
    %61 = vector.shape_cast %60 : vector<1x8x64xf32> to vector<8x64xf32>
    %62 = vector.shape_cast %59 : vector<8x64xf32> to vector<1x8x64xf32>
    tpu.vector_store %arg6[%c1_83, %c0_84, %c0_85], %62 {strides = array<i32>} : memref<2x8x64xf32, #tpu.memory_space<vmem>>, vector<1x8x64xf32>,
    return
  }
}

</mosaic_0001>

<llo_original>
// kernel: context_forward.1
$region0: #{context_forward.1}
  #allocation0 [shape = 'u32[]', space=smem, size = 0x4, offset = 0x4, fixed_abs, tag = 'smem constant byte address 0x4 - core index']
  #allocation1 [shape = 'u32[72,128]{1,0:T(1,128)}', space=vmem, size = 0x9000, scoped, tag = 'internal scratch']
  #allocation2 [shape = 'f32[8,512]{1,0:T(8,128)}', space=vmem, size = 0x4000, scoped, tag = 'scratch operand']
  #allocation3 [shape = 'f32[36,384]{1,0:T(8,128)}', space=vmem, size = 0xf000, scoped, tag = 'scratch operand']
  %s0 = inlined_call_operand.vmem [shape: f32[1,512], index: 0, kind: input, shape index: {}]
  %s1 = inlined_call_operand.vmem [shape: f32[4,9], index: 1, kind: input, shape index: {}]
  %s2 = inlined_call_operand.vmem [shape: f32[4,1], index: 2, kind: input, shape index: {}]
  %s3 = inlined_call_operand.vmem [shape: f32[8,36], index: 3, kind: input, shape index: {}]
  %s4 = inlined_call_operand.vmem [shape: f32[8,1], index: 4, kind: input, shape index: {}]
  %s5 = inlined_call_operand.vmem [shape: f32[144,64], index: 5, kind: input, shape index: {}]
  %s6 = inlined_call_operand.vmem [shape: f32[2,8,64], index: 6, kind: output, shape index: {}]
  %s7 = sld [smem:[#allocation0]]
  $region34: #{context_forward.1} parent=0
    _
  %s9 = ssub.s32 1, %s7
  %s10 = scalar_select 0, %s9, %s7
  // Predicated region
  $region2: #{context_forward.1} parent=0 // pred_check
    _
  $region3: #{context_forward.1} parent=0 // pred_check_branch
    %12 = sbr.rel (0) target = $region5
  $region4: #{context_forward.1} parent=0 // pred_region
    _
  $region5: #{context_forward.1} parent=0 // pred_fallthru
    _
  // Predicated region
  $region6: #{context_forward.1} parent=0 // pred_check
    _
  $region7: #{context_forward.1} parent=0 // pred_check_branch
    %14 = sbr.rel (0) target = $region9
  $region8: #{context_forward.1} parent=0 // pred_region
    _
  $region9: #{context_forward.1} parent=0 // pred_fallthru
    _
  // Predicated region
  $region10: #{context_forward.1} parent=0 // pred_check
    _
  $region11: #{context_forward.1} parent=0 // pred_check_branch
    %16 = sbr.rel (0) target = $region13
  $region12: #{context_forward.1} parent=0 // pred_region
    _
  $region13: #{context_forward.1} parent=0 // pred_fallthru
    _
  // Predicated region
  $region14: #{context_forward.1} parent=0 // pred_check
    _
  $region15: #{context_forward.1} parent=0 // pred_check_branch
    %18 = sbr.rel (0) target = $region17
  $region16: #{context_forward.1} parent=0 // pred_region
    _
  $region17: #{context_forward.1} parent=0 // pred_fallthru
    _
  // Predicated region
  $region18: #{context_forward.1} parent=0 // pred_check
    _
  $region19: #{context_forward.1} parent=0 // pred_check_branch
    %20 = sbr.rel (0) target = $region21
  $region20: #{context_forward.1} parent=0 // pred_region
    _
  $region21: #{context_forward.1} parent=0 // pred_fallthru
    _
  // Predicated region
  $region22: #{context_forward.1} parent=0 // pred_check
    _
  $region23: #{context_forward.1} parent=0 // pred_check_branch
    %22 = sbr.rel (0) target = $region25
  $region24: #{context_forward.1} parent=0 // pred_region
    _
  $region25: #{context_forward.1} parent=0 // pred_fallthru
    _
  %23 = vst [vmem:[#allocation2] sm:$0xff] 0.0
  %24 = vst [vmem:[#allocation2 + $0x8] sm:$0xff] 0.0
  %25 = vst [vmem:[#allocation2 + $0x10] sm:$0xff] 0.0
  %26 = vst [vmem:[#allocation2 + $0x18] sm:$0xff] 0.0
  %v27 = vld [vmem:[%s0] sm:$0x7]
  %v28 = vlaneseq
  %vm29 = vcmp.ge.s32.totalorder %v28, 0
  %vm30 = vcmp.lt.s32.totalorder %v28, 384
  %vm31 = vmand %vm29, %vm30
  %32 = vst.msk [vmem:[#allocation3] ss:$8 sm:$0x7] %vm31, %v27
  %33 = vst.msk [vmem:[#allocation3] ss:$8 sm:$0x0] %vm31, %v27
  %v34 = vld [vmem:[%s0] sm:$0xf]
  %36 = vrot.lane.b32.xlu0 %v34, 127
  %v37 = vpop.permute.xlu0 %36
  %v38 = vrot.slane %v37, 1
  %vm39 = vcmask 1039360
  %v40 = vsel %vm39, %v37, %v38
  %s42 = scalar_lea.vmem [#allocation3], 1
  %43 = vst.msk [vmem:[%s42] ss:$8 sm:$0x7] %vm31, %v40
  %44 = vst.msk [vmem:[%s42] ss:$8 sm:$0x0] %vm31, %v40
  %v45 = vld [vmem:[%s0] sm:$0xf]
  %47 = vrot.lane.b32.xlu0 %v45, 126
  %v48 = vpop.permute.xlu0 %47
  %v49 = vrot.slane %v48, 1
  %vm50 = vcmask 1031168
  %v51 = vsel %vm50, %v48, %v49
  %s53 = scalar_lea.vmem [#allocation3], 2
  %54 = vst.msk [vmem:[%s53] ss:$8 sm:$0x7] %vm31, %v51
  %55 = vst.msk [vmem:[%s53] ss:$8 sm:$0x0] %vm31, %v51
  %v56 = vld [vmem:[%s0] sm:$0xf]
  %58 = vrot.lane.b32.xlu0 %v56, 116
  %v59 = vpop.permute.xlu0 %58
  %v60 = vrot.slane %v59, 1
  %vm61 = vcmask 949248
  %v62 = vsel %vm61, %v59, %v60
  %s64 = scalar_lea.vmem [#allocation3], 3
  %65 = vst.msk [vmem:[%s64] ss:$8 sm:$0x7] %vm31, %v62
  %66 = vst.msk [vmem:[%s64] ss:$8 sm:$0x0] %vm31, %v62
  %v67 = vld [vmem:[%s0] sm:$0xf]
  %69 = vrot.lane.b32.xlu0 %v67, 115
  %v70 = vpop.permute.xlu0 %69
  %v71 = vrot.slane %v70, 1
  %vm72 = vcmask 941056
  %v73 = vsel %vm72, %v70, %v71
  %s75 = scalar_lea.vmem [#allocation3], 4
  %76 = vst.msk [vmem:[%s75] ss:$8 sm:$0x7] %vm31, %v73
  %77 = vst.msk [vmem:[%s75] ss:$8 sm:$0x0] %vm31, %v73
  %v78 = vld [vmem:[%s0] sm:$0xf]
  %80 = vrot.lane.b32.xlu0 %v78, 114
  %v81 = vpop.permute.xlu0 %80
  %v82 = vrot.slane %v81, 1
  %vm83 = vcmask 932864
  %v84 = vsel %vm83, %v81, %v82
  %s86 = scalar_lea.vmem [#allocation3], 5
  %87 = vst.msk [vmem:[%s86] ss:$8 sm:$0x7] %vm31, %v84
  %88 = vst.msk [vmem:[%s86] ss:$8 sm:$0x0] %vm31, %v84
  %v89 = vld [vmem:[%s0] sm:$0xf]
  %91 = vrot.lane.b32.xlu0 %v89, 104
  %v92 = vpop.permute.xlu0 %91
  %v93 = vrot.slane %v92, 1
  %vm94 = vcmask 850944
  %v95 = vsel %vm94, %v92, %v93
  %s97 = scalar_lea.vmem [#allocation3], 6
  %98 = vst.msk [vmem:[%s97] ss:$8 sm:$0x7] %vm31, %v95
  %99 = vst.msk [vmem:[%s97] ss:$8 sm:$0x0] %vm31, %v95
  %v100 = vld [vmem:[%s0] sm:$0xf]
  %102 = vrot.lane.b32.xlu0 %v100, 103
  %v103 = vpop.permute.xlu0 %102
  %v104 = vrot.slane %v103, 1
  %vm105 = vcmask 842752
  %v106 = vsel %vm105, %v103, %v104
  %s108 = scalar_lea.vmem [#allocation3], 7
  %109 = vst.msk [vmem:[%s108] ss:$8 sm:$0x7] %vm31, %v106
  %110 = vst.msk [vmem:[%s108] ss:$8 sm:$0x0] %vm31, %v106
  %v111 = vld [vmem:[%s0] sm:$0xf]
  %113 = vrot.lane.b32.xlu0 %v111, 102
  %v114 = vpop.permute.xlu0 %113
  %v115 = vrot.slane %v114, 1
  %vm116 = vcmask 834560
  %v117 = vsel %vm116, %v114, %v115
  %s119 = scalar_lea.vmem [#allocation3], 24
  %120 = vst.msk [vmem:[%s119] ss:$8 sm:$0x7] %vm31, %v117
  %121 = vst.msk [vmem:[%s119] ss:$8 sm:$0x0] %vm31, %v117
  %v122 = vld [vmem:[%s1] sm:$0xf]
  %v123 = vld [vmem:[#allocation3] sm:$0xff]
  %v124 = vld [vmem:[#allocation3 + $0x8] sm:$0xff]
  %v125 = vld [vmem:[#allocation3 + $0x10] sm:$0xff]
  %v126 = vld [vmem:[#allocation3 + $0x18] sm:$0x1]
  %v127 = vld [vmem:[#allocation3 + $0x20] sm:$0x1]
  %v128 = vld [vmem:[#allocation3 + $0x28] sm:$0x1]
  %v129 = vld [vmem:[%s2] sm:$0xf]
  %131 = vset.pattern.permute.xlu0 0
  %132 = vperm.xlu0 %131, %v129
  %v133 = vpop.permute.xlu0 %132
  %vm135 = vcmask 72704
  %v137 = vsel %vm135, %v122, 0
  %vm139 = vcmask 1040384
  %v141 = vsel %vm139, %v126, 0
  %v144 = vsel %vm139, %v127, 0
  %v147 = vsel %vm139, %v128, 0
  %149 = vmatpush.msra.mxu0 0.0
  %150 = vmatpush.msra.mxu0 0.0
  %151 = vmatpush.msra.mxu0 0.0
  %152 = vmatpush.msra.mxu0 0.0
  %153 = vmatpush.msra.mxu0 0.0
  %154 = vmatpush.msra.mxu0 0.0
  %155 = vmatpush.msra.mxu0 0.0
  %156 = vmatpush.msra.mxu0 0.0
  %157 = vmatpush.msra.mxu0 0.0
  %158 = vmatpush.msra.mxu0 0.0
  %159 = vmatpush.msra.mxu0 0.0
  %160 = vmatpush.msra.mxu0 0.0
  %161 = vmatpush.msra.mxu0 0.0
  %162 = vmatpush.msra.mxu0 0.0
  %163 = vmatpush.msra.mxu0 %v141
  %164 = vmatpush.msra.mxu0 %v123
  %165 = vmatmul.f32.gmra.mxu0 %v137
  %v166 = vpop.f32.mrf.mxu0
  %v167 = vadd.f32 %v133, %v166
  %168 = vdwg.mxu0
  %169 = vmatpush.msra.mxu0 0.0
  %170 = vmatpush.msra.mxu0 0.0
  %171 = vmatpush.msra.mxu0 0.0
  %172 = vmatpush.msra.mxu0 0.0
  %173 = vmatpush.msra.mxu0 0.0
  %174 = vmatpush.msra.mxu0 0.0
  %175 = vmatpush.msra.mxu0 0.0
  %176 = vmatpush.msra.mxu0 0.0
  %177 = vmatpush.msra.mxu0 0.0
  %178 = vmatpush.msra.mxu0 0.0
  %179 = vmatpush.msra.mxu0 0.0
  %180 = vmatpush.msra.mxu0 0.0
  %181 = vmatpush.msra.mxu0 0.0
  %182 = vmatpush.msra.mxu0 0.0
  %183 = vmatpush.msra.mxu0 %v144
  %184 = vmatpush.msra.mxu0 %v124
  %185 = vmatmul.f32.gmra.mxu0 %v137
  %v186 = vpop.f32.mrf.mxu0
  %v187 = vadd.f32 %v133, %v186
  %188 = vdwg.mxu0
  %189 = vmatpush.msra.mxu0 0.0
  %190 = vmatpush.msra.mxu0 0.0
  %191 = vmatpush.msra.mxu0 0.0
  %192 = vmatpush.msra.mxu0 0.0
  %193 = vmatpush.msra.mxu0 0.0
  %194 = vmatpush.msra.mxu0 0.0
  %195 = vmatpush.msra.mxu0 0.0
  %196 = vmatpush.msra.mxu0 0.0
  %197 = vmatpush.msra.mxu0 0.0
  %198 = vmatpush.msra.mxu0 0.0
  %199 = vmatpush.msra.mxu0 0.0
  %200 = vmatpush.msra.mxu0 0.0
  %201 = vmatpush.msra.mxu0 0.0
  %202 = vmatpush.msra.mxu0 0.0
  %203 = vmatpush.msra.mxu0 %v147
  %204 = vmatpush.msra.mxu0 %v125
  %205 = vmatmul.f32.gmra.mxu0 %v137
  %v206 = vpop.f32.mrf.mxu0
  %v207 = vadd.f32 %v133, %v206
  %208 = vdwg.mxu0
  %209 = vst [vmem:[#allocation2] sm:$0xf] %v167
  %210 = vst [vmem:[#allocation2 + $0x8] sm:$0xf] %v187
  %211 = vst [vmem:[#allocation2 + $0x10] sm:$0xf] %v207
  %v212 = vld [vmem:[#allocation2] sm:$0xf]
  %v213 = vld [vmem:[#allocation2 + $0x8] sm:$0xf]
  %v214 = vld [vmem:[#allocation2 + $0x10] sm:$0xf]
  %215 = vst [vmem:[#allocation3] sm:$0xf] %v212
  %216 = vst [vmem:[#allocation3 + $0x8] sm:$0xf] %v213
  %217 = vst [vmem:[#allocation3 + $0x10] sm:$0xf] %v214
  %v218 = vld [vmem:[#allocation2] sm:$0xf]
  %v219 = vld [vmem:[#allocation2 + $0x8] sm:$0xf]
  %v220 = vld [vmem:[#allocation2 + $0x10] sm:$0xf]
  %v221 = vld [vmem:[#allocation2 + $0x18] sm:$0xf]
  %v226 = vrot.slane %v218, 4
  %v227 = vrot.slane %v219, 4
  %v228 = vrot.slane %v220, 4
  %v229 = vrot.slane %v221, 4
  %230 = vrot.lane.b32.xlu0 %v226, 127
  %v231 = vpop.permute.xlu0 %230
  %232 = vrot.lane.b32.xlu0 %v227, 127
  %v233 = vpop.permute.xlu0 %232
  %234 = vrot.lane.b32.xlu0 %v228, 127
  %v235 = vpop.permute.xlu0 %234
  %236 = vrot.lane.b32.xlu0 %v229, 127
  %v237 = vpop.permute.xlu0 %236
  %v238 = vsel %vm39, %v231, %v233
  %v239 = vsel %vm39, %v233, %v235
  %v240 = vsel %vm39, %v235, %v237
  %244 = vst [vmem:[#allocation3] sm:$0xf0] %v238
  %245 = vst [vmem:[#allocation3 + $0x8] sm:$0xf0] %v239
  %246 = vst [vmem:[#allocation3 + $0x10] sm:$0xf0] %v240
  %v247 = vld [vmem:[#allocation2] sm:$0xf]
  %v248 = vld [vmem:[#allocation2 + $0x8] sm:$0xf]
  %v249 = vld [vmem:[#allocation2 + $0x10] sm:$0xf]
  %v250 = vld [vmem:[#allocation2 + $0x18] sm:$0xf]
  %255 = vrot.lane.b32.xlu0 %v247, 126
  %v256 = vpop.permute.xlu0 %255
  %257 = vrot.lane.b32.xlu0 %v248, 126
  %v258 = vpop.permute.xlu0 %257
  %259 = vrot.lane.b32.xlu0 %v249, 126
  %v260 = vpop.permute.xlu0 %259
  %261 = vrot.lane.b32.xlu0 %v250, 126
  %v262 = vpop.permute.xlu0 %261
  %v263 = vsel %vm50, %v256, %v258
  %v264 = vsel %vm50, %v258, %v260
  %v265 = vsel %vm50, %v260, %v262
  %269 = vst [vmem:[#allocation3 + $0x18] sm:$0xf] %v263
  %270 = vst [vmem:[#allocation3 + $0x20] sm:$0xf] %v264
  %271 = vst [vmem:[#allocation3 + $0x28] sm:$0xf] %v265
  %v272 = vld [vmem:[#allocation2] sm:$0xf]
  %v273 = vld [vmem:[#allocation2 + $0x8] sm:$0xf]
  %v274 = vld [vmem:[#allocation2 + $0x10] sm:$0xf]
  %v275 = vld [vmem:[#allocation2 + $0x18] sm:$0xf]
  %v280 = vrot.slane %v272, 4
  %v281 = vrot.slane %v273, 4
  %v282 = vrot.slane %v274, 4
  %v283 = vrot.slane %v275, 4
  %284 = vrot.lane.b32.xlu0 %v280, 116
  %v285 = vpop.permute.xlu0 %284
  %286 = vrot.lane.b32.xlu0 %v281, 116
  %v287 = vpop.permute.xlu0 %286
  %288 = vrot.lane.b32.xlu0 %v282, 116
  %v289 = vpop.permute.xlu0 %288
  %290 = vrot.lane.b32.xlu0 %v283, 116
  %v291 = vpop.permute.xlu0 %290
  %v292 = vsel %vm61, %v285, %v287
  %v293 = vsel %vm61, %v287, %v289
  %v294 = vsel %vm61, %v289, %v291
  %298 = vst [vmem:[#allocation3 + $0x18] sm:$0xf0] %v292
  %299 = vst [vmem:[#allocation3 + $0x20] sm:$0xf0] %v293
  %300 = vst [vmem:[#allocation3 + $0x28] sm:$0xf0] %v294
  %v301 = vld [vmem:[#allocation2] sm:$0xf]
  %v302 = vld [vmem:[#allocation2 + $0x8] sm:$0xf]
  %v303 = vld [vmem:[#allocation2 + $0x10] sm:$0xf]
  %v304 = vld [vmem:[#allocation2 + $0x18] sm:$0xf]
  %309 = vrot.lane.b32.xlu0 %v301, 115
  %v310 = vpop.permute.xlu0 %309
  %311 = vrot.lane.b32.xlu0 %v302, 115
  %v312 = vpop.permute.xlu0 %311
  %313 = vrot.lane.b32.xlu0 %v303, 115
  %v314 = vpop.permute.xlu0 %313
  %315 = vrot.lane.b32.xlu0 %v304, 115
  %v316 = vpop.permute.xlu0 %315
  %v317 = vsel %vm72, %v310, %v312
  %v318 = vsel %vm72, %v312, %v314
  %v319 = vsel %vm72, %v314, %v316
  %323 = vst [vmem:[#allocation3 + $0x30] sm:$0xf] %v317
  %324 = vst [vmem:[#allocation3 + $0x38] sm:$0xf] %v318
  %325 = vst [vmem:[#allocation3 + $0x40] sm:$0xf] %v319
  %v326 = vld [vmem:[#allocation2] sm:$0xf]
  %v327 = vld [vmem:[#allocation2 + $0x8] sm:$0xf]
  %v328 = vld [vmem:[#allocation2 + $0x10] sm:$0xf]
  %v329 = vld [vmem:[#allocation2 + $0x18] sm:$0xf]
  %v334 = vrot.slane %v326, 4
  %v335 = vrot.slane %v327, 4
  %v336 = vrot.slane %v328, 4
  %v337 = vrot.slane %v329, 4
  %338 = vrot.lane.b32.xlu0 %v334, 114
  %v339 = vpop.permute.xlu0 %338
  %340 = vrot.lane.b32.xlu0 %v335, 114
  %v341 = vpop.permute.xlu0 %340
  %342 = vrot.lane.b32.xlu0 %v336, 114
  %v343 = vpop.permute.xlu0 %342
  %344 = vrot.lane.b32.xlu0 %v337, 114
  %v345 = vpop.permute.xlu0 %344
  %v346 = vsel %vm83, %v339, %v341
  %v347 = vsel %vm83, %v341, %v343
  %v348 = vsel %vm83, %v343, %v345
  %352 = vst [vmem:[#allocation3 + $0x30] sm:$0xf0] %v346
  %353 = vst [vmem:[#allocation3 + $0x38] sm:$0xf0] %v347
  %354 = vst [vmem:[#allocation3 + $0x40] sm:$0xf0] %v348
  %v355 = vld [vmem:[#allocation2] sm:$0xf]
  %v356 = vld [vmem:[#allocation2 + $0x8] sm:$0xf]
  %v357 = vld [vmem:[#allocation2 + $0x10] sm:$0xf]
  %v358 = vld [vmem:[#allocation2 + $0x18] sm:$0xf]
  %363 = vrot.lane.b32.xlu0 %v355, 104
  %v364 = vpop.permute.xlu0 %363
  %365 = vrot.lane.b32.xlu0 %v356, 104
  %v366 = vpop.permute.xlu0 %365
  %367 = vrot.lane.b32.xlu0 %v357, 104
  %v368 = vpop.permute.xlu0 %367
  %369 = vrot.lane.b32.xlu0 %v358, 104
  %v370 = vpop.permute.xlu0 %369
  %v371 = vsel %vm94, %v364, %v366
  %v372 = vsel %vm94, %v366, %v368
  %v373 = vsel %vm94, %v368, %v370
  %377 = vst [vmem:[#allocation3 + $0x48] sm:$0xf] %v371
  %378 = vst [vmem:[#allocation3 + $0x50] sm:$0xf] %v372
  %379 = vst [vmem:[#allocation3 + $0x58] sm:$0xf] %v373
  %v380 = vld [vmem:[#allocation2] sm:$0xf]
  %v381 = vld [vmem:[#allocation2 + $0x8] sm:$0xf]
  %v382 = vld [vmem:[#allocation2 + $0x10] sm:$0xf]
  %v383 = vld [vmem:[#allocation2 + $0x18] sm:$0xf]
  %v388 = vrot.slane %v380, 4
  %v389 = vrot.slane %v381, 4
  %v390 = vrot.slane %v382, 4
  %v391 = vrot.slane %v383, 4
  %392 = vrot.lane.b32.xlu0 %v388, 103
  %v393 = vpop.permute.xlu0 %392
  %394 = vrot.lane.b32.xlu0 %v389, 103
  %v395 = vpop.permute.xlu0 %394
  %396 = vrot.lane.b32.xlu0 %v390, 103
  %v397 = vpop.permute.xlu0 %396
  %398 = vrot.lane.b32.xlu0 %v391, 103
  %v399 = vpop.permute.xlu0 %398
  %v400 = vsel %vm105, %v393, %v395
  %v401 = vsel %vm105, %v395, %v397
  %v402 = vsel %vm105, %v397, %v399
  %406 = vst [vmem:[#allocation3 + $0x48] sm:$0xf0] %v400
  %407 = vst [vmem:[#allocation3 + $0x50] sm:$0xf0] %v401
  %408 = vst [vmem:[#allocation3 + $0x58] sm:$0xf0] %v402
  %v409 = vld [vmem:[#allocation2] sm:$0xf]
  %v410 = vld [vmem:[#allocation2 + $0x8] sm:$0xf]
  %v411 = vld [vmem:[#allocation2 + $0x10] sm:$0xf]
  %v412 = vld [vmem:[#allocation2 + $0x18] sm:$0xf]
  %417 = vrot.lane.b32.xlu0 %v409, 102
  %v418 = vpop.permute.xlu0 %417
  %419 = vrot.lane.b32.xlu0 %v410, 102
  %v420 = vpop.permute.xlu0 %419
  %421 = vrot.lane.b32.xlu0 %v411, 102
  %v422 = vpop.permute.xlu0 %421
  %423 = vrot.lane.b32.xlu0 %v412, 102
  %v424 = vpop.permute.xlu0 %423
  %v425 = vsel %vm116, %v418, %v420
  %v426 = vsel %vm116, %v420, %v422
  %v427 = vsel %vm116, %v422, %v424
  %431 = vst [vmem:[#allocation3 + $0x60] sm:$0xf] %v425
  %432 = vst [vmem:[#allocation3 + $0x68] sm:$0xf] %v426
  %433 = vst [vmem:[#allocation3 + $0x70] sm:$0xf] %v427
  %v434 = vld [vmem:[%s3] sm:$0xff]
  %v435 = vld [vmem:[#allocation3] sm:$0xff]
  %v436 = vld [vmem:[#allocation3 + $0x8] sm:$0xff]
  %v437 = vld [vmem:[#allocation3 + $0x10] sm:$0xff]
  %v438 = vld [vmem:[#allocation3 + $0x18] sm:$0xff]
  %v439 = vld [vmem:[#allocation3 + $0x20] sm:$0xff]
  %v440 = vld [vmem:[#allocation3 + $0x28] sm:$0xff]
  %v441 = vld [vmem:[#allocation3 + $0x30] sm:$0xff]
  %v442 = vld [vmem:[#allocation3 + $0x38] sm:$0xff]
  %v443 = vld [vmem:[#allocation3 + $0x40] sm:$0xff]
  %v444 = vld [vmem:[#allocation3 + $0x48] sm:$0xff]
  %v445 = vld [vmem:[#allocation3 + $0x50] sm:$0xff]
  %v446 = vld [vmem:[#allocation3 + $0x58] sm:$0xff]
  %v447 = vld [vmem:[#allocation3 + $0x60] sm:$0xf]
  %v448 = vld [vmem:[#allocation3 + $0x68] sm:$0xf]
  %v449 = vld [vmem:[#allocation3 + $0x70] sm:$0xf]
  %v450 = vld [vmem:[%s4] sm:$0xff]
  %452 = vset.pattern.permute.xlu0 0
  %453 = vperm.xlu0 %452, %v450
  %v454 = vpop.permute.xlu0 %453
  %vm456 = vcmask 293888
  %v458 = vsel %vm456, %v434, 0
  %vm460 = vcmask 1043456
  %v462 = vsel %vm460, %v447, 0
  %v465 = vsel %vm460, %v448, 0
  %v468 = vsel %vm460, %v449, 0
  %470 = vmatpush.msra.mxu0 0.0
  %471 = vmatpush.msra.mxu0 0.0
  %472 = vmatpush.msra.mxu0 0.0
  %473 = vmatpush.msra.mxu0 0.0
  %474 = vmatpush.msra.mxu0 0.0
  %475 = vmatpush.msra.mxu0 0.0
  %476 = vmatpush.msra.mxu0 0.0
  %477 = vmatpush.msra.mxu0 0.0
  %478 = vmatpush.msra.mxu0 0.0
  %479 = vmatpush.msra.mxu0 0.0
  %480 = vmatpush.msra.mxu0 0.0
  %481 = vmatpush.msra.mxu0 %v462
  %482 = vmatpush.msra.mxu0 %v444
  %483 = vmatpush.msra.mxu0 %v441
  %484 = vmatpush.msra.mxu0 %v438
  %485 = vmatpush.msra.mxu0 %v435
  %486 = vmatmul.f32.gmra.mxu0 %v458
  %v487 = vpop.f32.mrf.mxu0
  %v488 = vadd.f32 %v454, %v487
  %489 = vdwg.mxu0
  %490 = vmatpush.msra.mxu0 0.0
  %491 = vmatpush.msra.mxu0 0.0
  %492 = vmatpush.msra.mxu0 0.0
  %493 = vmatpush.msra.mxu0 0.0
  %494 = vmatpush.msra.mxu0 0.0
  %495 = vmatpush.msra.mxu0 0.0
  %496 = vmatpush.msra.mxu0 0.0
  %497 = vmatpush.msra.mxu0 0.0
  %498 = vmatpush.msra.mxu0 0.0
  %499 = vmatpush.msra.mxu0 0.0
  %500 = vmatpush.msra.mxu0 0.0
  %501 = vmatpush.msra.mxu0 %v465
  %502 = vmatpush.msra.mxu0 %v445
  %503 = vmatpush.msra.mxu0 %v442
  %504 = vmatpush.msra.mxu0 %v439
  %505 = vmatpush.msra.mxu0 %v436
  %506 = vmatmul.f32.gmra.mxu0 %v458
  %v507 = vpop.f32.mrf.mxu0
  %v508 = vadd.f32 %v454, %v507
  %509 = vdwg.mxu0
  %510 = vmatpush.msra.mxu0 0.0
  %511 = vmatpush.msra.mxu0 0.0
  %512 = vmatpush.msra.mxu0 0.0
  %513 = vmatpush.msra.mxu0 0.0
  %514 = vmatpush.msra.mxu0 0.0
  %515 = vmatpush.msra.mxu0 0.0
  %516 = vmatpush.msra.mxu0 0.0
  %517 = vmatpush.msra.mxu0 0.0
  %518 = vmatpush.msra.mxu0 0.0
  %519 = vmatpush.msra.mxu0 0.0
  %520 = vmatpush.msra.mxu0 0.0
  %521 = vmatpush.msra.mxu0 %v468
  %522 = vmatpush.msra.mxu0 %v446
  %523 = vmatpush.msra.mxu0 %v443
  %524 = vmatpush.msra.mxu0 %v440
  %525 = vmatpush.msra.mxu0 %v437
  %526 = vmatmul.f32.gmra.mxu0 %v458
  %v527 = vpop.f32.mrf.mxu0
  %v528 = vadd.f32 %v454, %v527
  %529 = vdwg.mxu0
  %530 = vst [vmem:[#allocation2] sm:$0xff] %v488
  %531 = vst [vmem:[#allocation2 + $0x8] sm:$0xff] %v508
  %532 = vst [vmem:[#allocation2 + $0x10] sm:$0xff] %v528
  %v533 = vld [vmem:[%s5] sm:$0xff]
  %v534 = vld [vmem:[%s5 + $0x8] sm:$0xff]
  %v535 = vld [vmem:[%s5 + $0x10] sm:$0xff]
  %v536 = vld [vmem:[%s5 + $0x18] sm:$0xff]
  %v537 = vld [vmem:[%s5 + $0x20] sm:$0xff]
  %v538 = vld [vmem:[%s5 + $0x28] sm:$0xff]
  %v539 = vld [vmem:[%s5 + $0x30] sm:$0xff]
  %v540 = vld [vmem:[%s5 + $0x38] sm:$0xff]
  %v541 = vld [vmem:[%s5 + $0x40] sm:$0xff]
  %v542 = vld [vmem:[%s5 + $0x48] sm:$0xff]
  %v543 = vld [vmem:[%s5 + $0x50] sm:$0xff]
  %v544 = vld [vmem:[%s5 + $0x58] sm:$0xff]
  %v545 = vld [vmem:[%s5 + $0x60] sm:$0xff]
  %v546 = vld [vmem:[%s5 + $0x68] sm:$0xff]
  %v547 = vld [vmem:[%s5 + $0x70] sm:$0xff]
  %v548 = vld [vmem:[%s5 + $0x78] sm:$0xff]
  %v549 = vld [vmem:[%s5 + $0x80] sm:$0xff]
  %v550 = vld [vmem:[%s5 + $0x88] sm:$0xff]
  %v551 = vld [vmem:[#allocation2] sm:$0xff]
  %v552 = vld [vmem:[#allocation2 + $0x8] sm:$0xff]
  %vm553 = vcmask 130048
  %v555 = vsel %vm553, %v552, 0
  %557 = vmatpush.msra.mxu0 %v548
  %558 = vmatpush.msra.mxu0 %v547
  %559 = vmatpush.msra.mxu0 %v546
  %560 = vmatpush.msra.mxu0 %v545
  %561 = vmatpush.msra.mxu0 %v544
  %562 = vmatpush.msra.mxu0 %v543
  %563 = vmatpush.msra.mxu0 %v542
  %564 = vmatpush.msra.mxu0 %v541
  %565 = vmatpush.msra.mxu0 %v540
  %566 = vmatpush.msra.mxu0 %v539
  %567 = vmatpush.msra.mxu0 %v538
  %568 = vmatpush.msra.mxu0 %v537
  %569 = vmatpush.msra.mxu0 %v536
  %570 = vmatpush.msra.mxu0 %v535
  %571 = vmatpush.msra.mxu0 %v534
  %572 = vmatpush.msra.mxu0 %v533
  %573 = vmatmul.f32.gmra.mxu0 %v551
  %v574 = vpop.f32.mrf.mxu0
  %v575 = vadd.f32 0.0, %v574
  %576 = vdwg.mxu0
  %577 = vmatpush.msra.mxu0 0.0
  %578 = vmatpush.msra.mxu0 0.0
  %579 = vmatpush.msra.mxu0 0.0
  %580 = vmatpush.msra.mxu0 0.0
  %581 = vmatpush.msra.mxu0 0.0
  %582 = vmatpush.msra.mxu0 0.0
  %583 = vmatpush.msra.mxu0 0.0
  %584 = vmatpush.msra.mxu0 0.0
  %585 = vmatpush.msra.mxu0 0.0
  %586 = vmatpush.msra.mxu0 0.0
  %587 = vmatpush.msra.mxu0 0.0
  %588 = vmatpush.msra.mxu0 0.0
  %589 = vmatpush.msra.mxu0 0.0
  %590 = vmatpush.msra.mxu0 0.0
  %591 = vmatpush.msra.mxu0 %v550
  %592 = vmatpush.msra.mxu0 %v549
  %593 = vmatmul.f32.gmra.mxu0 %v555
  %v594 = vpop.f32.mrf.mxu0
  %v595 = vadd.f32 %v575, %v594
  %596 = vdwg.mxu0
  %vm597 = vcmask 523264
  %598 = vst.msk [vmem:[%s6] sm:$0xff] %vm597, %v595
  %v599 = vld [vmem:[#allocation2 + $0x8] sm:$0xff]
  %v600 = vld [vmem:[#allocation2 + $0x10] sm:$0xff]
  %603 = vrot.lane.b32.xlu0 %v599, 112
  %v604 = vpop.permute.xlu0 %603
  %605 = vrot.lane.b32.xlu0 %v600, 112
  %v606 = vpop.permute.xlu0 %605
  %vm607 = vcmask 916480
  %v608 = vsel %vm607, %v604, %v606
  %v610 = vsel %vm553, %v606, 0
  %612 = vmatpush.msra.mxu0 %v548
  %613 = vmatpush.msra.mxu0 %v547
  %614 = vmatpush.msra.mxu0 %v546
  %615 = vmatpush.msra.mxu0 %v545
  %616 = vmatpush.msra.mxu0 %v544
  %617 = vmatpush.msra.mxu0 %v543
  %618 = vmatpush.msra.mxu0 %v542
  %619 = vmatpush.msra.mxu0 %v541
  %620 = vmatpush.msra.mxu0 %v540
  %621 = vmatpush.msra.mxu0 %v539
  %622 = vmatpush.msra.mxu0 %v538
  %623 = vmatpush.msra.mxu0 %v537
  %624 = vmatpush.msra.mxu0 %v536
  %625 = vmatpush.msra.mxu0 %v535
  %626 = vmatpush.msra.mxu0 %v534
  %627 = vmatpush.msra.mxu0 %v533
  %628 = vmatmul.f32.gmra.mxu0 %v608
  %v629 = vpop.f32.mrf.mxu0
  %v630 = vadd.f32 0.0, %v629
  %631 = vdwg.mxu0
  %632 = vmatpush.msra.mxu0 0.0
  %633 = vmatpush.msra.mxu0 0.0
  %634 = vmatpush.msra.mxu0 0.0
  %635 = vmatpush.msra.mxu0 0.0
  %636 = vmatpush.msra.mxu0 0.0
  %637 = vmatpush.msra.mxu0 0.0
  %638 = vmatpush.msra.mxu0 0.0
  %639 = vmatpush.msra.mxu0 0.0
  %640 = vmatpush.msra.mxu0 0.0
  %641 = vmatpush.msra.mxu0 0.0
  %642 = vmatpush.msra.mxu0 0.0
  %643 = vmatpush.msra.mxu0 0.0
  %644 = vmatpush.msra.mxu0 0.0
  %645 = vmatpush.msra.mxu0 0.0
  %646 = vmatpush.msra.mxu0 %v550
  %647 = vmatpush.msra.mxu0 %v549
  %648 = vmatmul.f32.gmra.mxu0 %v610
  %v649 = vpop.f32.mrf.mxu0
  %v650 = vadd.f32 %v630, %v649
  %651 = vdwg.mxu0
  %s652 = scalar_lea.vmem %s6, 8
  %653 = vst.msk [vmem:[%s652] sm:$0xff] %vm597, %v650
  // Predicated region
  $region26: #{context_forward.1} parent=0 // pred_check
    _
  $region27: #{context_forward.1} parent=0 // pred_check_branch
    %655 = sbr.rel (0) target = $region29
  $region28: #{context_forward.1} parent=0 // pred_region
    _
  $region29: #{context_forward.1} parent=0 // pred_fallthru
    _
  // Predicated region
  $region30: #{context_forward.1} parent=0 // pred_check
    _
  $region31: #{context_forward.1} parent=0 // pred_check_branch
    %657 = sbr.rel (0) target = $region33
  $region32: #{context_forward.1} parent=0 // pred_region
    _
  $region33: #{context_forward.1} parent=0 // pred_fallthru
    _

</llo_original>
